<compile_context>
chip_gen: v7x
topology: tpu7x:2x2x1
jax: 0.10.0
libtpu: 0.0.40
codegen_flags: <defaults>
</compile_context>

<pallas_src>
import jax
import jax.numpy as jnp
from jax.experimental import pallas as pl
from jax.experimental.pallas import tpu as pltpu

# TODO(synk): `config.threshold` is external in the original code; use a fixed
# deterministic default here.
DEFAULT_THRESHOLD = 128.0

_LANES = 128          # lane width of the flattened slab
_MAX_TILE_ROWS = 4096 # 4096 x 128 f32 = 2 MiB per input per buffer (fits all gens)


def _make_accuracy_kernel(threshold: float):
    def kernel(inp_ref, tgt_ref, out_ref):
        # Compare in f32 exactly like the reference (x * 255 >= threshold);
        # the cast is a no-op for f32 inputs and widens bf16 per-vreg.
        inp = inp_ref[...].astype(jnp.float32) * 255.0
        tgt = tgt_ref[...].astype(jnp.float32) * 255.0
        match = (inp >= threshold) == (tgt >= threshold)   # TP + TN positions
        # Per-lane partial counts (sublane reduction only); exact in f32 since
        # each lane sums at most _MAX_TILE_ROWS (< 2^24) elements.
        out_ref[...] = jnp.sum(match.astype(jnp.float32), axis=0, keepdims=True)

    return kernel


def accuracy_pallas(inp, tgt, threshold=None):
    if threshold is None:
        threshold = DEFAULT_THRESHOLD
    assert inp.shape == tgt.shape

    total = 1
    for d in inp.shape:
        total *= d

    # Flatten to a lane/sublane-friendly 2D slab.
    rows = -(-total // _LANES)
    tm = min(_MAX_TILE_ROWS, ((rows + 7) // 8) * 8)
    padded_rows = ((rows + tm - 1) // tm) * tm
    padded_total = padded_rows * _LANES
    pad = padded_total - total
    num_tiles = padded_rows // tm

    flat_i = inp.reshape(-1)
    flat_t = tgt.reshape(-1)
    if pad:
        # Pad both with the same value: identical values always compare equal,
        # so padded positions contribute exactly `pad` matches (subtracted below).
        flat_i = jnp.concatenate([flat_i, jnp.zeros((pad,), dtype=flat_i.dtype)])
        flat_t = jnp.concatenate([flat_t, jnp.zeros((pad,), dtype=flat_t.dtype)])

    inp2 = flat_i.reshape(padded_rows, _LANES)
    tgt2 = flat_t.reshape(padded_rows, _LANES)

    kernel = _make_accuracy_kernel(float(threshold))

    itemsize = jnp.dtype(inp.dtype).itemsize
    cost = pl.CostEstimate(
        flops=5 * padded_total,
        transcendentals=0,
        bytes_accessed=2 * padded_total * itemsize + num_tiles * _LANES * 4,
    )

    partials = pl.pallas_call(
        kernel,
        out_shape=jax.ShapeDtypeStruct((num_tiles, _LANES), jnp.float32),
        grid_spec=pltpu.PrefetchScalarGridSpec(
            num_scalar_prefetch=0,
            grid=(num_tiles,),
            in_specs=[
                pl.BlockSpec((tm, _LANES), lambda i: (i, 0)),
                pl.BlockSpec((tm, _LANES), lambda i: (i, 0)),
            ],
            out_specs=pl.BlockSpec((1, _LANES), lambda i: (i, 0)),
        ),
        compiler_params=pltpu.CompilerParams(
            dimension_semantics=("parallel",),
        ),
        cost_estimate=cost,
    )(inp2, tgt2)

    # Exact integer accumulation of the per-tile partial counts (int32 is exact
    # up to ~2.1B elements), then a single divide for the batch-mean accuracy.
    total_matches = jnp.sum(partials.astype(jnp.int32)) - pad
    return total_matches.astype(jnp.float32) / float(total)


def accuracy_ref(inp, tgt, threshold=None):
    """Pure-JAX reference mirroring the PyTorch module."""
    if threshold is None:
        threshold = DEFAULT_THRESHOLD
    tgt = tgt * 255.0
    inp = inp * 255.0
    above_t = (tgt >= threshold).astype(jnp.int32)
    under_t = (tgt < threshold).astype(jnp.int32)
    above_p = (inp >= threshold).astype(jnp.int32)
    under_p = (inp < threshold).astype(jnp.int32)
    axes = tuple(range(1, inp.ndim))
    tp = jnp.sum(above_t * above_p, axis=axes)
    fn = jnp.sum(above_t * under_p, axis=axes)
    tn = jnp.sum(under_t * under_p, axis=axes)
    fp = jnp.sum(under_t * above_p, axis=axes)
    acc = (tp + tn) / (tp + tn + fn + fp)
    return jnp.mean(acc)


if __name__ == "__main__":
    key = jax.random.PRNGKey(0)
    k1, k2 = jax.random.split(key)
    B, C, H, W = 2, 4, 16, 16
    # values in [0, 1] like normalized images
    x = jax.random.uniform(k1, (B, C, H, W), dtype=jnp.float32)
    y = jax.random.uniform(k2, (B, C, H, W), dtype=jnp.float32)

    out = accuracy_pallas(x, y)
    out = jax.block_until_ready(out)

    ref = accuracy_ref(x, y)
    assert jnp.allclose(out, ref, atol=1e-6, rtol=1e-6), (out, ref)
    print("KERNEL_OK")
</pallas_src>

<mosaic_0001>
module attributes {stable_mosaic.version = 11 : i64} {
  func.func @kernel(%arg0: i32, %arg1: memref<16x128xf32, #tpu.memory_space<vmem>>, %arg2: memref<16x128xf32, #tpu.memory_space<vmem>>, %arg3: memref<1x128xf32, #tpu.memory_space<vmem>>) attributes {dimension_semantics = [#tpu.dimension_semantics<parallel>], iteration_bounds = array<i64: 1>, scalar_prefetch = 0 : i64, scratch_operands = 0 : i64, tpu.core_type = #tpu.core_type<tc>, window_params = [{transform_indices = @transform_0, window_bounds = array<i64: 16, 128>}, {transform_indices = @transform_1, window_bounds = array<i64: 16, 128>}, {transform_indices = @transform_2, window_bounds = array<i64: 1, 128>}]} {
    %c0 = arith.constant 0 : index
    %c0_0 = arith.constant 0 : index
    %0 = vector.load %arg1[%c0, %c0_0] : memref<16x128xf32, #tpu.memory_space<vmem>>, vector<16x128xf32>
    %cst = arith.constant 2.550000e+02 : f32
    %1 = vector.broadcast %cst : f32 to vector<16x128xf32>
    %2 = arith.mulf %0, %1 : vector<16x128xf32>
    %c0_1 = arith.constant 0 : index
    %c0_2 = arith.constant 0 : index
    %3 = vector.load %arg2[%c0_1, %c0_2] : memref<16x128xf32, #tpu.memory_space<vmem>>, vector<16x128xf32>
    %cst_3 = arith.constant 2.550000e+02 : f32
    %4 = vector.broadcast %cst_3 : f32 to vector<16x128xf32>
    %5 = arith.mulf %3, %4 : vector<16x128xf32>
    %cst_4 = arith.constant 1.280000e+02 : f32
    %6 = vector.broadcast %cst_4 : f32 to vector<16x128xf32>
    %7 = arith.cmpf oge, %2, %6 : vector<16x128xf32>
    %cst_5 = arith.constant 1.280000e+02 : f32
    %8 = vector.broadcast %cst_5 : f32 to vector<16x128xf32>
    %9 = arith.cmpf oge, %5, %8 : vector<16x128xf32>
    %10 = arith.xori %7, %9 : vector<16x128xi1>
    %cst_6 = arith.constant dense<true> : vector<16x128xi1>
    %11 = arith.xori %10, %cst_6 : vector<16x128xi1>
    %12 = arith.extui %11 : vector<16x128xi1> to vector<16x128xi32>
    %13 = arith.sitofp %12 : vector<16x128xi32> to vector<16x128xf32>
    %cst_7 = arith.constant dense<0.000000e+00> : vector<128xf32>
    %14 = vector.multi_reduction <add>, %13, %cst_7 [0] : vector<16x128xf32> to vector<128xf32>
    %15 = vector.shape_cast %14 : vector<128xf32> to vector<1x128xf32>
    %c0_8 = arith.constant 0 : index
    %c0_9 = arith.constant 0 : index
    %16 = vector.load %arg3[%c0_8, %c0_9] : memref<1x128xf32, #tpu.memory_space<vmem>>, vector<1x128xf32>
    tpu.vector_store %arg3[%c0_8, %c0_9], %15 {strides = array<i32>} : memref<1x128xf32, #tpu.memory_space<vmem>>, vector<1x128xf32>,
    return
  }
  func.func @transform_0(%arg0: i32) -> (i32, i32) {
    %c0_i32 = arith.constant 0 : i32
    %c0_i32_0 = arith.constant 0 : i32
    return %arg0, %c0_i32 : i32, i32
  }
  func.func @transform_1(%arg0: i32) -> (i32, i32) {
    %c0_i32 = arith.constant 0 : i32
    %c0_i32_0 = arith.constant 0 : i32
    return %arg0, %c0_i32 : i32, i32
  }
  func.func @transform_2(%arg0: i32) -> (i32, i32) {
    %c0_i32 = arith.constant 0 : i32
    %c0_i32_0 = arith.constant 0 : i32
    return %arg0, %c0_i32 : i32, i32
  }
}

</mosaic_0001>

<llo_original>
// kernel: tpu_custom_call.1
$region0: #{tpu_custom_call.1}
  #allocation0 [shape = 'u32[]', space=smem, size = 0x4, offset = 0x4, fixed_abs, tag = 'smem constant byte address 0x4 - core index']
  #allocation1 [shape = 'u32[144,128]{1,0:T(1,128)}', space=vmem, size = 0x12000, scoped, tag = 'internal scratch']
  %s0 = inlined_call_operand.hbm [shape: f32[16,128], index: 0, kind: input, shape index: {}]
  %s1 = inlined_call_operand.hbm [shape: f32[16,128], index: 1, kind: input, shape index: {}]
  %s2 = inlined_call_operand.hbm [shape: f32[1,128], index: 2, kind: output, shape index: {}]
  %s3 = sld [smem:[#allocation0]]
  $region26: #{tpu_custom_call.1} parent=0
    _
  %s5 = ssub.s32 1, %s3
  %s6 = scalar_select 0, %s5, %s3
  $region1: #{tpu_custom_call.1} parent=0
    #allocation2 [shape = 'u8[8192]{0}', space=vmem, size = 0x2000, scoped, tag = 'input window, operand 0, single buffered']
    #allocation3 [shape = 's32[1]{0}', space=sflag, size = 0x4, scoped, tag = 'scoped memory for tpu_custom_call.1']
    #allocation4 [shape = 's32[1]{0}', space=sflag, size = 0x4, scoped, tag = 'scoped memory for tpu_custom_call.1']
    #allocation5 [shape = 'u8[8192]{0}', space=vmem, size = 0x2000, scoped, tag = 'input window, operand 1, single buffered']
    #allocation6 [shape = 's32[1]{0}', space=sflag, size = 0x4, scoped, tag = 'scoped memory for tpu_custom_call.1']
    #allocation7 [shape = 'u8[512]{0}', space=vmem, size = 0x400, scoped, tag = 'output window, operand 0, single buffered']
    %7 = vsyncpa [#allocation3], 0
    %8 = vsyncpa [#allocation6], 0
    %9 = vsyncpa [#allocation4], 0
    // Predicated region
    $region2: #{tpu_custom_call.1} parent=1 // pred_check
      _
    $region3: #{tpu_custom_call.1} parent=1 // pred_check_branch
      %11 = sbr.rel (0) target = $region5
    $region4: #{tpu_custom_call.1} parent=1 // pred_region
      %s13 = ssub.s32 256, 256
      %14 = vsyncadd [#allocation3], %s13
      %s15 = sshll.u32 [#allocation2], 4
      %s16 = int_to_ptr.vmem [resolvable:$true] %s15
      %21 = dma.hbm_to_vmem [thread:$0]  %s0, 256, %s16, [#allocation3], 128, 128, 8
    $region5: #{tpu_custom_call.1} parent=1 // pred_fallthru
      _
    // Predicated region
    $region6: #{tpu_custom_call.1} parent=1 // pred_check
      _
    $region7: #{tpu_custom_call.1} parent=1 // pred_check_branch
      %23 = sbr.rel (0) target = $region9
    $region8: #{tpu_custom_call.1} parent=1 // pred_region
      %s25 = ssub.s32 256, 256
      %26 = vsyncadd [#allocation6], %s25
      %s27 = sshll.u32 [#allocation5], 4
      %s28 = int_to_ptr.vmem [resolvable:$true] %s27
      %33 = dma.hbm_to_vmem [thread:$0]  %s1, 256, %s28, [#allocation6], 128, 128, 8
    $region9: #{tpu_custom_call.1} parent=1 // pred_fallthru
      _
    // Predicated region
    $region10: #{tpu_custom_call.1} parent=1 // pred_check
      _
    $region11: #{tpu_custom_call.1} parent=1 // pred_check_branch
      %35 = sbr.rel (0) target = $region13
    $region12: #{tpu_custom_call.1} parent=1 // pred_region
      %36 = dma.done [#allocation3], 256
    $region13: #{tpu_custom_call.1} parent=1 // pred_fallthru
      _
    // Predicated region
    $region14: #{tpu_custom_call.1} parent=1 // pred_check
      _
    $region15: #{tpu_custom_call.1} parent=1 // pred_check_branch
      %38 = sbr.rel (0) target = $region17
    $region16: #{tpu_custom_call.1} parent=1 // pred_region
      %39 = dma.done [#allocation6], 256
    $region17: #{tpu_custom_call.1} parent=1 // pred_fallthru
      _
    %v40 = vld [vmem:[#allocation2] sm:$0xff]
    %v41 = vld [vmem:[#allocation2 + $0x8] sm:$0xff]
    %v42 = vmul.f32 %v40, 255.0
    %v43 = vmul.f32 %v41, 255.0
    %v44 = vld [vmem:[#allocation5] sm:$0xff]
    %v45 = vld [vmem:[#allocation5 + $0x8] sm:$0xff]
    %v46 = vmul.f32 %v44, 255.0
    %v47 = vmul.f32 %v45, 255.0
    %vm48 = vcmp.ge.f32.partialorder %v42, 128.0
    %vm49 = vcmp.ge.f32.partialorder %v43, 128.0
    %vm50 = vcmp.ge.f32.partialorder %v46, 128.0
    %vm51 = vcmp.ge.f32.partialorder %v47, 128.0
    %vm52 = vmxor %vm48, %vm50
    %vm53 = vmxor %vm49, %vm51
    %vm54 = vmxor %vm52, 1
    %vm55 = vmxor %vm53, 1
    %v56 = vsel %vm54, 1, 0
    %v57 = vsel %vm55, 1, 0
    %v58 = vcvt.s32.f32 %v56
    %v59 = vcvt.s32.f32 %v57
    %v60 = vadd.f32 %v58, %v59
    %v61 = vrot.slane %v60, 4
    %v62 = vadd.f32 %v60, %v61
    %v63 = vrot.slane %v62, 2
    %v64 = vadd.f32 %v62, %v63
    %v65 = vrot.slane %v64, 1
    %v66 = vadd.f32 %v64, %v65
    %67 = vst [vmem:[#allocation7] sm:$0x1] %v66
    // Predicated region
    $region18: #{tpu_custom_call.1} parent=1 // pred_check
      _
    $region19: #{tpu_custom_call.1} parent=1 // pred_check_branch
      %69 = sbr.rel (0) target = $region21
    $region20: #{tpu_custom_call.1} parent=1 // pred_region
      %s71 = ssub.s32 16, 16
      %72 = vsyncadd [#allocation4], %s71
      %s74 = sshll.u32 [#allocation7], 4
      %s75 = int_to_ptr.vmem [resolvable:$true] %s74
      %77 = dma.vmem_to_hbm [thread:$0]  %s75, 16, %s2, [#allocation4]
    $region21: #{tpu_custom_call.1} parent=1 // pred_fallthru
      _
    // Predicated region
    $region22: #{tpu_custom_call.1} parent=1 // pred_check
      _
    $region23: #{tpu_custom_call.1} parent=1 // pred_check_branch
      %79 = sbr.rel (0) target = $region25
    $region24: #{tpu_custom_call.1} parent=1 // pred_region
      %80 = dma.done [#allocation4], 16
    $region25: #{tpu_custom_call.1} parent=1 // pred_fallthru
      _
    %81 = vsyncpa [#allocation3], 1
    %82 = vsyncpa [#allocation6], 1
    %83 = vsyncpa [#allocation4], 1

</llo_original>
